<compile_context>
chip_gen: v5e
topology: v5e:2x2
jax: 0.10.0
libtpu: 0.0.40
codegen_flags: <defaults>
</compile_context>

<pallas_src>
import jax
import jax.numpy as jnp
from jax.experimental import pallas as pl
from jax.experimental.pallas import tpu as pltpu


def _fusion_kernel(x_ref, w_ref, b_ref, out_ref):
    # Single MXU pass: [TM, F_total] @ [F_total, C_pad] with f32 accumulation,
    # then f32 bias add.  Output tile is lane-dense (C_pad % 128 == 0) so the
    # store is an unmasked vst.
    acc = jnp.dot(x_ref[...], w_ref[...], preferred_element_type=jnp.float32)
    out_ref[...] = (acc + b_ref[...]).astype(out_ref.dtype)


def mixed_cls_forward(vis_feat, txt_feat, tab_feat, w, b,
                      *, compute_dtype=jnp.bfloat16, tm=1024):
    """Pallas implementation of SumModel.mixed_cls on the fused features.

    vis_feat: [B, F_vis], txt_feat: [B, F_txt], tab_feat: [B, F_tab]
    w:        [F_vis + F_txt + F_tab, C]   (nn.Linear weight, pre-transposed)
    b:        [C]
    returns:  [B, C] float32
    """
    B = vis_feat.shape[0]
    F_total_chk = vis_feat.shape[1] + txt_feat.shape[1] + tab_feat.shape[1]
    C = w.shape[1]
    assert w.shape[0] == F_total_chk, "weight rows must match concat feature dim"

    # Glue (no compute): concatenate once in the wrapper so the kernel does a
    # single dot against the whole weight; concat order (vis, txt, tab) must
    # match the weight's row layout.
    x = jnp.concatenate([vis_feat, txt_feat, tab_feat], axis=-1)
    F_total = x.shape[1]

    # Lane-dense output: pad the class dim to a multiple of 128 with zero
    # weight columns / zero bias so in-kernel stores are unmasked.  The extra
    # columns are sliced off after the call.
    c_pad = -(-C // 128) * 128
    pad_c = c_pad - C

    # bf16 operands for the MXU; bias / accumulation / output stay f32.
    x = x.astype(compute_dtype)
    w_c = jnp.pad(w.astype(compute_dtype), ((0, 0), (0, pad_c)))
    bias2d = jnp.pad(b.reshape(1, C).astype(jnp.float32), ((0, 0), (0, pad_c)))

    # Batch tile: full batch if small, else TM-row tiles (multiple of 8).
    # Tile footprint (TM=1024): x bf16 160 KiB + out f32 512 KiB, double-
    # buffered ~1.4 MiB — well within the default VMEM window on all chips.
    tm_eff = B if B <= tm else tm
    grid = (pl.cdiv(B, tm_eff),)

    out = pl.pallas_call(
        _fusion_kernel,
        out_shape=jax.ShapeDtypeStruct((B, c_pad), jnp.float32),
        grid=grid,
        in_specs=[
            pl.BlockSpec((tm_eff, F_total), lambda i: (i, 0)),   # activations
            pl.BlockSpec((F_total, c_pad), lambda i: (0, 0)),    # weight (resident)
            pl.BlockSpec((1, c_pad), lambda i: (0, 0)),          # bias (resident)
        ],
        out_specs=pl.BlockSpec((tm_eff, c_pad), lambda i: (i, 0)),
        compiler_params=pltpu.CompilerParams(
            dimension_semantics=("parallel",)),                  # shards TCs on v7x
    )(x, w_c, bias2d)

    # Drop the zero-padded classes (cheap XLA slice).
    return out[:, :C]


if __name__ == "__main__":
    key = jax.random.PRNGKey(0)

    # Small, forward-consistent shapes.
    B = 2            # batch
    num_vis = 32     # in_features of vis model's final Linear
    num_txt = 32     # in_features of txtcls model's final Linear
    num_tab = 16     # in_features of tab model's final Linear
    num_classes = 14

    k1, k2, k3, k4, k5 = jax.random.split(key, 5)

    # Captured penultimate features (what the forward hooks would record).
    vis_feat = jax.random.normal(k1, (B, num_vis), dtype=jnp.float32)
    txt_feat = jax.random.normal(k2, (B, num_txt), dtype=jnp.float32)
    tab_feat = jax.random.normal(k3, (B, num_tab), dtype=jnp.float32)

    # Deterministic mixed_cls parameters (nn.Linear(in, classes)): weight [C, F_total].
    F_total = num_vis + num_txt + num_tab
    w_linear = (jax.random.normal(k4, (num_classes, F_total), dtype=jnp.float32)
                * (1.0 / jnp.sqrt(F_total)))
    b_linear = jax.random.normal(k5, (num_classes,), dtype=jnp.float32) * 0.01

    # Kernel takes the transposed weight [F_total, C].
    out_mix = mixed_cls_forward(vis_feat, txt_feat, tab_feat,
                                w_linear.T, b_linear)
    out_mix = jax.block_until_ready(out_mix)
    assert out_mix.shape == (B, num_classes)

    # Reference check 1: matched precision (bf16 operands, f32 accumulation).
    mixed = jnp.concatenate([vis_feat, txt_feat, tab_feat], axis=-1)
    ref_bf16 = jnp.dot(mixed.astype(jnp.bfloat16),
                       w_linear.T.astype(jnp.bfloat16),
                       preferred_element_type=jnp.float32) + b_linear
    assert jnp.allclose(out_mix, ref_bf16, atol=1e-3, rtol=1e-3)

    # Reference check 2: loose sanity against the full-f32 concat + linear.
    ref_f32 = mixed @ w_linear.T + b_linear
    assert jnp.allclose(out_mix, ref_f32, atol=0.15)

    print("KERNEL_OK")
</pallas_src>

<mosaic_0001>
module attributes {stable_mosaic.version = 11 : i64} {
  func.func @_fusion_kernel(%arg0: i32, %arg1: memref<2x80xbf16, #tpu.memory_space<vmem>>, %arg2: memref<80x128xbf16, #tpu.memory_space<vmem>>, %arg3: memref<1x128xf32, #tpu.memory_space<vmem>>, %arg4: memref<2x128xf32, #tpu.memory_space<vmem>>) attributes {dimension_semantics = [#tpu.dimension_semantics<parallel>], iteration_bounds = array<i64: 1>, scalar_prefetch = 0 : i64, scratch_operands = 0 : i64, tpu.core_type = #tpu.core_type<tc>, window_params = [{transform_indices = @transform_0, window_bounds = array<i64: 2, 80>}, {pipeline_mode = #tpu.pipeline_mode<synchronous>, transform_indices = @transform_1, window_bounds = array<i64: 80, 128>}, {pipeline_mode = #tpu.pipeline_mode<synchronous>, transform_indices = @transform_2, window_bounds = array<i64: 1, 128>}, {transform_indices = @transform_3, window_bounds = array<i64: 2, 128>}]} {
    %c0 = arith.constant 0 : index
    %c0_0 = arith.constant 0 : index
    %0 = vector.load %arg1[%c0, %c0_0] : memref<2x80xbf16, #tpu.memory_space<vmem>>, vector<2x80xbf16>
    %c0_1 = arith.constant 0 : index
    %c0_2 = arith.constant 0 : index
    %1 = vector.load %arg2[%c0_1, %c0_2] : memref<80x128xbf16, #tpu.memory_space<vmem>>, vector<80x128xbf16>
    %cst = arith.constant dense<0.000000e+00> : vector<2x128xf32>
    %2 = tpu.matmul %0, %1, %cst {dimension_numbers = #tpu.dot_dimension_numbers<[1], [0], [0], [1], [0, 0, 1, 1], [], []>} : vector<2x80xbf16>, vector<80x128xbf16>, vector<2x128xf32> -> vector<2x128xf32>
    %c0_3 = arith.constant 0 : index
    %c0_4 = arith.constant 0 : index
    %3 = vector.load %arg3[%c0_3, %c0_4] : memref<1x128xf32, #tpu.memory_space<vmem>>, vector<1x128xf32>
    %4 = vector.broadcast %3 : vector<1x128xf32> to vector<2x128xf32>
    %5 = arith.addf %2, %4 : vector<2x128xf32>
    %c0_5 = arith.constant 0 : index
    %c0_6 = arith.constant 0 : index
    %6 = vector.load %arg4[%c0_5, %c0_6] : memref<2x128xf32, #tpu.memory_space<vmem>>, vector<2x128xf32>
    tpu.vector_store %arg4[%c0_5, %c0_6], %5 {strides = array<i32>} : memref<2x128xf32, #tpu.memory_space<vmem>>, vector<2x128xf32>,
    return
  }
  func.func @transform_0(%arg0: i32) -> (i32, i32) {
    %c0_i32 = arith.constant 0 : i32
    %c0_i32_0 = arith.constant 0 : i32
    return %arg0, %c0_i32 : i32, i32
  }
  func.func @transform_1(%arg0: i32) -> (i32, i32) {
    %c0_i32 = arith.constant 0 : i32
    %c0_i32_0 = arith.constant 0 : i32
    %c0_i32_1 = arith.constant 0 : i32
    return %c0_i32, %c0_i32_0 : i32, i32
  }
  func.func @transform_2(%arg0: i32) -> (i32, i32) {
    %c0_i32 = arith.constant 0 : i32
    %c0_i32_0 = arith.constant 0 : i32
    %c0_i32_1 = arith.constant 0 : i32
    return %c0_i32, %c0_i32_0 : i32, i32
  }
  func.func @transform_3(%arg0: i32) -> (i32, i32) {
    %c0_i32 = arith.constant 0 : i32
    %c0_i32_0 = arith.constant 0 : i32
    return %arg0, %c0_i32 : i32, i32
  }
}

</mosaic_0001>

<llo_original>
// kernel: tpu_custom_call.1
$region0: #{tpu_custom_call.1}
  #allocation0 [shape = 'u32[]', space=smem, size = 0x4, offset = 0x4, fixed_abs, tag = 'smem constant byte address 0x4 - core index']
  #allocation1 [shape = 'u32[72,128]{1,0:T(1,128)}', space=vmem, size = 0x9000, scoped, tag = 'internal scratch']
  %s0 = inlined_call_operand.hbm [shape: bf16[2,80], index: 0, kind: input, shape index: {}]
  %s1 = inlined_call_operand.hbm [shape: bf16[80,128], index: 1, kind: input, shape index: {}]
  %s2 = inlined_call_operand.vmem [shape: f32[1,128], index: 2, kind: input, shape index: {}]
  %s3 = inlined_call_operand.hbm [shape: f32[2,128], index: 3, kind: output, shape index: {}]
  %s4 = sld [smem:[#allocation0]]
  $region30: #{tpu_custom_call.1} parent=0
    _
  %s6 = ssub.s32 1, %s4
  %s7 = scalar_select 0, %s6, %s4
  $region1: #{tpu_custom_call.1} parent=0
    #allocation2 [shape = 'u8[512]{0}', space=vmem, size = 0x400, scoped, tag = 'input window, operand 0, single buffered']
    #allocation3 [shape = 's32[1]{0}', space=sflag, size = 0x4, scoped, tag = 'scoped memory for tpu_custom_call.1']
    #allocation4 [shape = 's32[1]{0}', space=sflag, size = 0x4, scoped, tag = 'scoped memory for tpu_custom_call.1']
    #allocation5 [shape = 'u8[20480]{0}', space=vmem, size = 0x5000, scoped, tag = 'input window, operand 1, single buffered']
    #allocation6 [shape = 's32[1]{0}', space=sflag, size = 0x4, scoped, tag = 'scoped memory for tpu_custom_call.1']
    #allocation7 [shape = 'u8[1024]{0}', space=vmem, size = 0x400, scoped, tag = 'output window, operand 0, single buffered']
    %8 = vsyncpa [#allocation3], 0
    %9 = vsyncpa [#allocation6], 0
    %10 = vsyncpa [#allocation4], 0
    // Predicated region
    $region2: #{tpu_custom_call.1} parent=1 // pred_check
      _
    $region3: #{tpu_custom_call.1} parent=1 // pred_check_branch
      %12 = sbr.rel (0) target = $region5
    $region4: #{tpu_custom_call.1} parent=1 // pred_region
      %14 = vsyncadd [#allocation3], 0
      %s16 = sshll.u32 %s0, 4
      %s17 = int_to_ptr.hbm [resolvable:$true] %s16
      %s18 = sshll.u32 [#allocation2], 4
      %s19 = int_to_ptr.vmem [resolvable:$true] %s18
      %21 = dma.hbm_to_vmem [thread:$0]  %s17, 16, %s19, [#allocation3]
    $region5: #{tpu_custom_call.1} parent=1 // pred_fallthru
      _
    // Predicated region
    $region6: #{tpu_custom_call.1} parent=1 // pred_check
      _
    $region7: #{tpu_custom_call.1} parent=1 // pred_check_branch
      %23 = sbr.rel (0) target = $region9
    $region8: #{tpu_custom_call.1} parent=1 // pred_region
      %25 = vsyncadd [#allocation6], 0
      %s26 = sshll.u32 %s1, 4
      %s27 = int_to_ptr.hbm [resolvable:$true] %s26
      %s28 = sshll.u32 [#allocation5], 4
      %s29 = int_to_ptr.vmem [resolvable:$true] %s28
      %34 = dma.hbm_to_vmem [thread:$0]  %s27, 640, %s29, [#allocation6], 64, 64, 4
    $region9: #{tpu_custom_call.1} parent=1 // pred_fallthru
      _
    // Predicated region
    $region10: #{tpu_custom_call.1} parent=1 // pred_check
      _
    $region11: #{tpu_custom_call.1} parent=1 // pred_check_branch
      %36 = sbr.rel (0) target = $region13
    $region12: #{tpu_custom_call.1} parent=1 // pred_region
      _
    $region13: #{tpu_custom_call.1} parent=1 // pred_fallthru
      _
    // Predicated region
    $region14: #{tpu_custom_call.1} parent=1 // pred_check
      _
    $region15: #{tpu_custom_call.1} parent=1 // pred_check_branch
      %38 = sbr.rel (0) target = $region17
    $region16: #{tpu_custom_call.1} parent=1 // pred_region
      %40 = dma.done [#allocation3], 16
    $region17: #{tpu_custom_call.1} parent=1 // pred_fallthru
      _
    // Predicated region
    $region18: #{tpu_custom_call.1} parent=1 // pred_check
      _
    $region19: #{tpu_custom_call.1} parent=1 // pred_check_branch
      %42 = sbr.rel (0) target = $region21
    $region20: #{tpu_custom_call.1} parent=1 // pred_region
      %44 = dma.done [#allocation6], 640
    $region21: #{tpu_custom_call.1} parent=1 // pred_fallthru
      _
    %v46 = vld [vmem:[#allocation2] sm:$0x1]
    %v47 = vld [vmem:[#allocation5] sm:$0xf]
    %v48 = vld [vmem:[#allocation5 + $0x4] sm:$0xf]
    %v49 = vld [vmem:[#allocation5 + $0x8] sm:$0xf]
    %v50 = vld [vmem:[#allocation5 + $0xc] sm:$0xf]
    %v51 = vld [vmem:[#allocation5 + $0x10] sm:$0xf]
    %v52 = vld [vmem:[#allocation5 + $0x14] sm:$0xf]
    %v53 = vld [vmem:[#allocation5 + $0x18] sm:$0xf]
    %v54 = vld [vmem:[#allocation5 + $0x1c] sm:$0xf]
    %v55 = vld [vmem:[#allocation5 + $0x20] sm:$0xf]
    %v56 = vld [vmem:[#allocation5 + $0x24] sm:$0xf]
    %v57 = vld [vmem:[%s2] sm:$0x1]
    %v59 = vperm.slane %v57, 0
    %v71 = vunpack.c.l.b16 %v47
    %v72 = vunpack.c.l.b16 %v48
    %v73 = vunpack.c.l.b16 %v49
    %v74 = vunpack.c.l.b16 %v50
    %v75 = vunpack.c.l.b16 %v51
    %v76 = vunpack.c.l.b16 %v52
    %v77 = vunpack.c.l.b16 %v53
    %v78 = vunpack.c.l.b16 %v54
    %v79 = vunpack.c.l.b16 %v55
    %v80 = vunpack.c.l.b16 %v56
    %v81 = vpack.c.b16 %v72, %v71
    %v82 = vpack.c.b16 %v74, %v73
    %v83 = vpack.c.b16 %v76, %v75
    %v84 = vpack.c.b16 %v78, %v77
    %v85 = vpack.c.b16 %v80, %v79
    %vm91 = vcmask 654336
    %v93 = vsel %vm91, %v46, 0
    %95 = vmatpush.bf16.msra.mxu0 0
    %96 = vmatpush.bf16.msra.mxu0 0
    %97 = vmatpush.bf16.msra.mxu0 0
    %98 = vmatpush.bf16.msra.mxu0 %v85
    %99 = vmatpush.bf16.msra.mxu0 %v84
    %100 = vmatpush.bf16.msra.mxu0 %v83
    %101 = vmatpush.bf16.msra.mxu0 %v82
    %102 = vmatpush.bf16.msra.mxu0 %v81
    %103 = vmatmul.bf16.gmra.mxu0 %v93
    %v104 = vpop.f32.mrf.mxu0
    %v105 = vadd.f32 %v59, %v104
    %v106 = vpop.f32.mrf.mxu0
    %107 = vdwg.mxu0
    %108 = vst [vmem:[#allocation7] sm:$0x3] %v105
    // Predicated region
    $region22: #{tpu_custom_call.1} parent=1 // pred_check
      _
    $region23: #{tpu_custom_call.1} parent=1 // pred_check_branch
      %110 = sbr.rel (0) target = $region25
    $region24: #{tpu_custom_call.1} parent=1 // pred_region
      %112 = vsyncadd [#allocation4], 0
      %s114 = sshll.u32 [#allocation7], 4
      %s115 = int_to_ptr.vmem [resolvable:$true] %s114
      %s116 = sshll.u32 %s3, 4
      %s117 = int_to_ptr.hbm [resolvable:$true] %s116
      %119 = dma.vmem_to_hbm [thread:$0]  %s115, 32, %s117, [#allocation4]
    $region25: #{tpu_custom_call.1} parent=1 // pred_fallthru
      _
    // Predicated region
    $region26: #{tpu_custom_call.1} parent=1 // pred_check
      _
    $region27: #{tpu_custom_call.1} parent=1 // pred_check_branch
      %121 = sbr.rel (0) target = $region29
    $region28: #{tpu_custom_call.1} parent=1 // pred_region
      %123 = dma.done [#allocation4], 32
    $region29: #{tpu_custom_call.1} parent=1 // pred_fallthru
      _
    %124 = vsyncpa [#allocation3], 1
    %125 = vsyncpa [#allocation6], 1
    %126 = vsyncpa [#allocation4], 1

</llo_original>
